<compile_context>
chip_gen: v7x
topology: tpu7x:2x2x1
jax: 0.10.0
libtpu: 0.0.40
codegen_flags: <defaults>
</compile_context>

<pallas_src>
import jax
import jax.numpy as jnp
from jax import lax
from jax.experimental import pallas as pl
from jax.experimental.pallas import tpu as pltpu


def _softq_kernel(x_ref, w1_ref, b1_ref, w2_ref, b2_ref, w3_ref, b3_ref, q_ref):
    x = x_ref[...]                                                     # [tb, D_in] f32

    # linear1 + relu
    h1 = jnp.dot(x, w1_ref[...], preferred_element_type=jnp.float32) + b1_ref[...]
    h1 = jnp.maximum(h1, 0.0)                                          # [tb, H]

    # linear2 + relu
    h2 = jnp.dot(h1, w2_ref[...], preferred_element_type=jnp.float32) + b2_ref[...]
    h2 = jnp.maximum(h2, 0.0)                                          # [tb, H]

    # linear3 head, computed directly batch-major (lane-dense) via an A @ B^T
    # contraction (same "NT" dim numbers the flash-attention kernels use):
    #   qT[0, b] = sum_h w3[0, h] * h2[b, h]
    qT = lax.dot_general(w3_ref[...], h2,
                         dimension_numbers=(((1,), (1,)), ((), ())),
                         preferred_element_type=jnp.float32)           # [1, tb]
    q_ref[...] = (qT + b3_ref[...]).reshape(q_ref.shape)               # (1, 1, tb)


def _num_tensorcores():
    """Best-effort TensorCore count of the current device (defaults to 1)."""
    try:
        kind = jax.devices()[0].device_kind.lower()
    except Exception:
        return 1
    if "v7" in kind:
        return 2                      # v7x: 2 TCs per chip
    if "v4" in kind or "v5p" in kind:
        return 2                      # megacore parts
    return 1                          # v5e / v6e / unknown


def _pick_batch_tile(batch, num_tc=1, max_rows=2048):
    """One full-batch tile on single-TC parts (grid is a serial loop there);
    num_tc tiles on multi-TC parts; only shrink further if a tile would exceed
    max_rows (keeps activations comfortably inside scoped VMEM at H<=256)."""
    if num_tc <= 1 and batch <= max_rows:
        return batch
    best = None
    upper = min(batch, max_rows)
    for t in range(8, upper + 1, 8):
        if batch % t == 0 and batch // t >= num_tc:
            best = t
    return best if best is not None else batch


def soft_q_forward(state, action, params, *, batch_tile=None):
    """SoftQNetwork forward with a Pallas TPU kernel.

    state:  [B, obs_dim]  float32
    action: [B, n_action] float32
    params: w1 [obs_dim+n_action, H], b1 [1, H], w2 [H, H], b2 [1, H],
            w3 [H, 1], b3 [1, 1]   (weights stored [in, out], i.e. PyTorch W^T)
    returns q_val [B, 1] float32
    """
    B, obs_dim = state.shape
    _, act_dim = action.shape
    d_in = obs_dim + act_dim
    H = params["w1"].shape[1]

    tb = batch_tile if batch_tile is not None else _pick_batch_tile(B, _num_tensorcores())
    assert B % tb == 0, "batch must be divisible by batch_tile"
    assert tb == B or tb % 8 == 0, "batch_tile must be a multiple of 8 (sublanes)"
    n_tiles = B // tb

    # Concat once in the wrapper (cheap) so layer 1 is a single matmul in-kernel.
    x = jnp.concatenate([state, action], axis=-1).astype(jnp.float32)

    w1 = params["w1"].astype(jnp.float32)                 # [d_in, H]
    b1 = params["b1"].astype(jnp.float32).reshape(1, H)
    w2 = params["w2"].astype(jnp.float32)                 # [H, H]
    b2 = params["b2"].astype(jnp.float32).reshape(1, H)
    w3 = params["w3"].astype(jnp.float32).reshape(1, H)   # [H,1] -> row vector
    b3 = params["b3"].astype(jnp.float32).reshape(1, 1)

    def const(shape):
        # Constant-index weight/bias blocks (same full-array tile every grid step).
        return pl.BlockSpec(shape, lambda i: (0, 0))

    flops = 2 * B * (d_in * H + H * H + H * 1)
    bytes_accessed = 4 * (x.size + w1.size + b1.size + w2.size + b2.size
                          + w3.size + b3.size + B)

    q_t = pl.pallas_call(
        _softq_kernel,
        out_shape=jax.ShapeDtypeStruct((n_tiles, 1, tb), jnp.float32),
        grid_spec=pltpu.PrefetchScalarGridSpec(
            num_scalar_prefetch=0,
            grid=(n_tiles,),
            in_specs=[
                pl.BlockSpec((tb, d_in), lambda i: (i, 0)),   # x tile
                const((d_in, H)),     # W1
                const((1, H)),        # b1
                const((H, H)),        # W2
                const((1, H)),        # b2
                const((1, H)),        # W3 (row)
                const((1, 1)),        # b3
            ],
            out_specs=pl.BlockSpec((1, 1, tb), lambda i: (i, 0, 0)),
        ),
        compiler_params=pltpu.CompilerParams(
            dimension_semantics=("parallel",)),
        cost_estimate=pl.CostEstimate(
            flops=flops, transcendentals=0, bytes_accessed=bytes_accessed),
    )(x, w1, b1, w2, b2, w3, b3)

    # (n_tiles, 1, tb) is batch-contiguous -> reshape straight to [B, 1].
    return q_t.reshape(B, 1)


def init_params(key, obs_dim, n_action, hidden_dim, w_init=0.003):
    """Parameter init mirroring the PyTorch module (weights stored [in, out])."""
    ks = jax.random.split(key, 6)
    in1 = obs_dim + n_action

    def default_linear(kw, kb, fan_in, fan_out):
        # PyTorch nn.Linear default: U(-1/sqrt(fan_in), 1/sqrt(fan_in))
        bound = 1.0 / jnp.sqrt(float(fan_in))
        w = jax.random.uniform(kw, (fan_in, fan_out), jnp.float32, -bound, bound)
        b = jax.random.uniform(kb, (1, fan_out), jnp.float32, -bound, bound)
        return w, b

    w1, b1 = default_linear(ks[0], ks[1], in1, hidden_dim)
    w2, b2 = default_linear(ks[2], ks[3], hidden_dim, hidden_dim)
    # linear3: U(-w_init, w_init) as in the module
    w3 = jax.random.uniform(ks[4], (hidden_dim, 1), jnp.float32, -w_init, w_init)
    b3 = jax.random.uniform(ks[5], (1, 1), jnp.float32, -w_init, w_init)
    return dict(w1=w1, b1=b1, w2=w2, b2=b2, w3=w3, b3=b3)


def reference_forward(state, action, params):
    x = jnp.concatenate([state, action], axis=-1)
    h1 = jnp.maximum(x @ params["w1"] + params["b1"], 0.0)
    h2 = jnp.maximum(h1 @ params["w2"] + params["b2"], 0.0)
    return h2 @ params["w3"] + params["b3"]


if __name__ == "__main__":
    # Small shapes consistent with the module: batch=16, obs=24, n_action=8, hidden=32
    B, OBS, ACT, HID = 16, 24, 8, 32

    key = jax.random.PRNGKey(0)
    k_s, k_a, k_p = jax.random.split(key, 3)

    state = jax.random.normal(k_s, (B, OBS), dtype=jnp.float32)
    action = jax.random.normal(k_a, (B, ACT), dtype=jnp.float32)
    params = init_params(k_p, OBS, ACT, HID)

    q = soft_q_forward(state, action, params)
    q = jax.block_until_ready(q)

    q_ref = reference_forward(state, action, params)
    assert q.shape == (B, 1)
    # all-f32 compute -> tight tolerance vs the pure-JAX reference
    assert jnp.allclose(q, q_ref, atol=2e-3, rtol=2e-3), (
        f"max abs diff {float(jnp.max(jnp.abs(q - q_ref)))}")

    print("KERNEL_OK")
</pallas_src>

<mosaic_0001>
module attributes {stable_mosaic.version = 11 : i64} {
  func.func @_softq_kernel(%arg0: i32, %arg1: memref<16x32xf32, #tpu.memory_space<vmem>>, %arg2: memref<32x32xf32, #tpu.memory_space<vmem>>, %arg3: memref<1x32xf32, #tpu.memory_space<vmem>>, %arg4: memref<32x32xf32, #tpu.memory_space<vmem>>, %arg5: memref<1x32xf32, #tpu.memory_space<vmem>>, %arg6: memref<1x32xf32, #tpu.memory_space<vmem>>, %arg7: memref<1x1xf32, #tpu.memory_space<vmem>>, %arg8: memref<1x1x16xf32, #tpu.memory_space<vmem>>) attributes {dimension_semantics = [#tpu.dimension_semantics<parallel>], iteration_bounds = array<i64: 1>, scalar_prefetch = 0 : i64, scratch_operands = 0 : i64, tpu.core_type = #tpu.core_type<tc>, window_params = [{transform_indices = @transform_0, window_bounds = array<i64: 16, 32>}, {pipeline_mode = #tpu.pipeline_mode<synchronous>, transform_indices = @transform_1, window_bounds = array<i64: 32, 32>}, {pipeline_mode = #tpu.pipeline_mode<synchronous>, transform_indices = @transform_2, window_bounds = array<i64: 1, 32>}, {pipeline_mode = #tpu.pipeline_mode<synchronous>, transform_indices = @transform_3, window_bounds = array<i64: 32, 32>}, {pipeline_mode = #tpu.pipeline_mode<synchronous>, transform_indices = @transform_4, window_bounds = array<i64: 1, 32>}, {pipeline_mode = #tpu.pipeline_mode<synchronous>, transform_indices = @transform_5, window_bounds = array<i64: 1, 32>}, {pipeline_mode = #tpu.pipeline_mode<synchronous>, transform_indices = @transform_6, window_bounds = array<i64: 1, 1>}, {transform_indices = @transform_7, window_bounds = array<i64: 1, 1, 16>}]} {
    %c0 = arith.constant 0 : index
    %c0_0 = arith.constant 0 : index
    %0 = vector.load %arg1[%c0, %c0_0] : memref<16x32xf32, #tpu.memory_space<vmem>>, vector<16x32xf32>
    %c0_1 = arith.constant 0 : index
    %c0_2 = arith.constant 0 : index
    %1 = vector.load %arg2[%c0_1, %c0_2] : memref<32x32xf32, #tpu.memory_space<vmem>>, vector<32x32xf32>
    %cst = arith.constant dense<0.000000e+00> : vector<16x32xf32>
    %2 = tpu.matmul %0, %1, %cst {dimension_numbers = #tpu.dot_dimension_numbers<[1], [0], [0], [1], [0, 0, 1, 1], [], []>} : vector<16x32xf32>, vector<32x32xf32>, vector<16x32xf32> -> vector<16x32xf32>
    %c0_3 = arith.constant 0 : index
    %c0_4 = arith.constant 0 : index
    %3 = vector.load %arg3[%c0_3, %c0_4] : memref<1x32xf32, #tpu.memory_space<vmem>>, vector<1x32xf32>
    %4 = vector.broadcast %3 : vector<1x32xf32> to vector<16x32xf32>
    %5 = arith.addf %2, %4 : vector<16x32xf32>
    %cst_5 = arith.constant 0.000000e+00 : f32
    %6 = vector.broadcast %cst_5 : f32 to vector<16x32xf32>
    %7 = arith.maximumf %5, %6 : vector<16x32xf32>
    %c0_6 = arith.constant 0 : index
    %c0_7 = arith.constant 0 : index
    %8 = vector.load %arg4[%c0_6, %c0_7] : memref<32x32xf32, #tpu.memory_space<vmem>>, vector<32x32xf32>
    %cst_8 = arith.constant dense<0.000000e+00> : vector<16x32xf32>
    %9 = tpu.matmul %7, %8, %cst_8 {dimension_numbers = #tpu.dot_dimension_numbers<[1], [0], [0], [1], [0, 0, 1, 1], [], []>} : vector<16x32xf32>, vector<32x32xf32>, vector<16x32xf32> -> vector<16x32xf32>
    %c0_9 = arith.constant 0 : index
    %c0_10 = arith.constant 0 : index
    %10 = vector.load %arg5[%c0_9, %c0_10] : memref<1x32xf32, #tpu.memory_space<vmem>>, vector<1x32xf32>
    %11 = vector.broadcast %10 : vector<1x32xf32> to vector<16x32xf32>
    %12 = arith.addf %9, %11 : vector<16x32xf32>
    %cst_11 = arith.constant 0.000000e+00 : f32
    %13 = vector.broadcast %cst_11 : f32 to vector<16x32xf32>
    %14 = arith.maximumf %12, %13 : vector<16x32xf32>
    %c0_12 = arith.constant 0 : index
    %c0_13 = arith.constant 0 : index
    %15 = vector.load %arg6[%c0_12, %c0_13] : memref<1x32xf32, #tpu.memory_space<vmem>>, vector<1x32xf32>
    %cst_14 = arith.constant dense<0.000000e+00> : vector<1x16xf32>
    %16 = tpu.matmul %15, %14, %cst_14 {dimension_numbers = #tpu.dot_dimension_numbers<[1], [1], [0], [0], [0, 0, 1, 0], [], []>} : vector<1x32xf32>, vector<16x32xf32>, vector<1x16xf32> -> vector<1x16xf32>
    %c0_15 = arith.constant 0 : index
    %c0_16 = arith.constant 0 : index
    %17 = vector.load %arg7[%c0_15, %c0_16] : memref<1x1xf32, #tpu.memory_space<vmem>>, vector<1x1xf32>
    %18 = vector.broadcast %17 : vector<1x1xf32> to vector<1x16xf32>
    %19 = arith.addf %16, %18 : vector<1x16xf32>
    %20 = vector.shape_cast %19 : vector<1x16xf32> to vector<1x1x16xf32>
    %c0_17 = arith.constant 0 : index
    %c0_18 = arith.constant 0 : index
    %c0_19 = arith.constant 0 : index
    %21 = vector.load %arg8[%c0_17, %c0_18, %c0_19] : memref<1x1x16xf32, #tpu.memory_space<vmem>>, vector<1x1x16xf32>
    tpu.vector_store %arg8[%c0_17, %c0_18, %c0_19], %20 {strides = array<i32>} : memref<1x1x16xf32, #tpu.memory_space<vmem>>, vector<1x1x16xf32>,
    return
  }
  func.func @transform_0(%arg0: i32) -> (i32, i32) {
    %c0_i32 = arith.constant 0 : i32
    %c0_i32_0 = arith.constant 0 : i32
    return %arg0, %c0_i32 : i32, i32
  }
  func.func @transform_1(%arg0: i32) -> (i32, i32) {
    %c0_i32 = arith.constant 0 : i32
    %c0_i32_0 = arith.constant 0 : i32
    %c0_i32_1 = arith.constant 0 : i32
    return %c0_i32, %c0_i32_0 : i32, i32
  }
  func.func @transform_2(%arg0: i32) -> (i32, i32) {
    %c0_i32 = arith.constant 0 : i32
    %c0_i32_0 = arith.constant 0 : i32
    %c0_i32_1 = arith.constant 0 : i32
    return %c0_i32, %c0_i32_0 : i32, i32
  }
  func.func @transform_3(%arg0: i32) -> (i32, i32) {
    %c0_i32 = arith.constant 0 : i32
    %c0_i32_0 = arith.constant 0 : i32
    %c0_i32_1 = arith.constant 0 : i32
    return %c0_i32, %c0_i32_0 : i32, i32
  }
  func.func @transform_4(%arg0: i32) -> (i32, i32) {
    %c0_i32 = arith.constant 0 : i32
    %c0_i32_0 = arith.constant 0 : i32
    %c0_i32_1 = arith.constant 0 : i32
    return %c0_i32, %c0_i32_0 : i32, i32
  }
  func.func @transform_5(%arg0: i32) -> (i32, i32) {
    %c0_i32 = arith.constant 0 : i32
    %c0_i32_0 = arith.constant 0 : i32
    %c0_i32_1 = arith.constant 0 : i32
    return %c0_i32, %c0_i32_0 : i32, i32
  }
  func.func @transform_6(%arg0: i32) -> (i32, i32) {
    %c0_i32 = arith.constant 0 : i32
    %c0_i32_0 = arith.constant 0 : i32
    %c0_i32_1 = arith.constant 0 : i32
    return %c0_i32, %c0_i32_0 : i32, i32
  }
  func.func @transform_7(%arg0: i32) -> (i32, i32, i32) {
    %c0_i32 = arith.constant 0 : i32
    %c0_i32_0 = arith.constant 0 : i32
    %c0_i32_1 = arith.constant 0 : i32
    return %arg0, %c0_i32, %c0_i32_0 : i32, i32, i32
  }
}

</mosaic_0001>

<llo_original>
// kernel: tpu_custom_call.1
$region0: #{tpu_custom_call.1}
  #allocation0 [shape = 'u32[]', space=smem, size = 0x4, offset = 0x4, fixed_abs, tag = 'smem constant byte address 0x4 - core index']
  #allocation1 [shape = 'u32[144,128]{1,0:T(1,128)}', space=vmem, size = 0x12000, scoped, tag = 'internal scratch']
  #allocation2 [shape = 'f32[1,1]{1,0:T(1,128)S(1)}', space=vmem, size = 0x200, scoped, tag = 'scoped memory for tpu_custom_call.1']
  %s0 = inlined_call_operand.hbm [shape: f32[16,32], index: 0, kind: input, shape index: {}]
  %s1 = inlined_call_operand.hbm [shape: f32[32,32], index: 1, kind: input, shape index: {}]
  %s2 = inlined_call_operand.vmem [shape: f32[1,32], index: 2, kind: input, shape index: {}]
  %s3 = inlined_call_operand.hbm [shape: f32[32,32], index: 3, kind: input, shape index: {}]
  %s4 = inlined_call_operand.vmem [shape: f32[1,32], index: 4, kind: input, shape index: {}]
  %s5 = inlined_call_operand.vmem [shape: f32[1,32], index: 5, kind: input, shape index: {}]
  %s6 = inlined_call_operand.<no memory space> [shape: f32[1,1], index: 6, kind: input, shape index: {}]
  %s7 = inlined_call_operand.hbm [shape: f32[1,1,16], index: 7, kind: output, shape index: {}]
  %s8 = sld [smem:[#allocation0]]
  $region50: #{tpu_custom_call.1} parent=0
    _
  %s10 = ssub.s32 1, %s8
  %s11 = scalar_select 0, %s10, %s8
  %v12 = vstv %s6
  %13 = vst [vmem:[#allocation2] sm:$0x1] %v12
  $region1: #{tpu_custom_call.1} parent=0
    #allocation3 [shape = 'u8[8192]{0}', space=vmem, size = 0x2000, scoped, tag = 'input window, operand 0, single buffered']
    #allocation4 [shape = 's32[1]{0}', space=sflag, size = 0x4, scoped, tag = 'scoped memory for tpu_custom_call.1']
    #allocation5 [shape = 's32[1]{0}', space=sflag, size = 0x4, scoped, tag = 'scoped memory for tpu_custom_call.1']
    #allocation6 [shape = 'u8[16384]{0}', space=vmem, size = 0x4000, scoped, tag = 'input window, operand 1, single buffered']
    #allocation7 [shape = 's32[1]{0}', space=sflag, size = 0x4, scoped, tag = 'scoped memory for tpu_custom_call.1']
    #allocation8 [shape = 'u8[16384]{0}', space=vmem, size = 0x4000, scoped, tag = 'input window, operand 3, single buffered']
    #allocation9 [shape = 'u8[512]{0}', space=vmem, size = 0x400, scoped, tag = 'output window, operand 0, single buffered']
    %14 = vsyncpa [#allocation4], 0
    %15 = vsyncpa [#allocation7], 0
    %16 = vsyncpa [#allocation5], 0
    // Predicated region
    $region2: #{tpu_custom_call.1} parent=1 // pred_check
      _
    $region3: #{tpu_custom_call.1} parent=1 // pred_check_branch
      %18 = sbr.rel (0) target = $region5
    $region4: #{tpu_custom_call.1} parent=1 // pred_region
      %s20 = ssub.s32 256, 256
      %21 = vsyncadd [#allocation4], %s20
      %s22 = sshll.u32 [#allocation3], 4
      %s23 = int_to_ptr.vmem [resolvable:$true] %s22
      %28 = dma.hbm_to_vmem [thread:$0]  %s0, 256, %s23, [#allocation4], 128, 128, 8
    $region5: #{tpu_custom_call.1} parent=1 // pred_fallthru
      _
    // Predicated region
    $region6: #{tpu_custom_call.1} parent=1 // pred_check
      _
    $region7: #{tpu_custom_call.1} parent=1 // pred_check_branch
      %30 = sbr.rel (0) target = $region9
    $region8: #{tpu_custom_call.1} parent=1 // pred_region
      %s32 = ssub.s32 512, 512
      %33 = vsyncadd [#allocation7], %s32
      %s34 = sshll.u32 [#allocation6], 4
      %s35 = int_to_ptr.vmem [resolvable:$true] %s34
      %40 = dma.hbm_to_vmem [thread:$0]  %s1, 512, %s35, [#allocation7], 128, 128, 8
    $region9: #{tpu_custom_call.1} parent=1 // pred_fallthru
      _
    // Predicated region
    $region10: #{tpu_custom_call.1} parent=1 // pred_check
      _
    $region11: #{tpu_custom_call.1} parent=1 // pred_check_branch
      %42 = sbr.rel (0) target = $region13
    $region12: #{tpu_custom_call.1} parent=1 // pred_region
      _
    $region13: #{tpu_custom_call.1} parent=1 // pred_fallthru
      _
    // Predicated region
    $region14: #{tpu_custom_call.1} parent=1 // pred_check
      _
    $region15: #{tpu_custom_call.1} parent=1 // pred_check_branch
      %44 = sbr.rel (0) target = $region17
    $region16: #{tpu_custom_call.1} parent=1 // pred_region
      %s46 = ssub.s32 512, 512
      %47 = vsyncadd [#allocation7], %s46
      %s48 = sshll.u32 [#allocation8], 4
      %s49 = int_to_ptr.vmem [resolvable:$true] %s48
      %54 = dma.hbm_to_vmem [thread:$0]  %s3, 512, %s49, [#allocation7], 128, 128, 8
    $region17: #{tpu_custom_call.1} parent=1 // pred_fallthru
      _
    // Predicated region
    $region18: #{tpu_custom_call.1} parent=1 // pred_check
      _
    $region19: #{tpu_custom_call.1} parent=1 // pred_check_branch
      %56 = sbr.rel (0) target = $region21
    $region20: #{tpu_custom_call.1} parent=1 // pred_region
      _
    $region21: #{tpu_custom_call.1} parent=1 // pred_fallthru
      _
    // Predicated region
    $region22: #{tpu_custom_call.1} parent=1 // pred_check
      _
    $region23: #{tpu_custom_call.1} parent=1 // pred_check_branch
      %58 = sbr.rel (0) target = $region25
    $region24: #{tpu_custom_call.1} parent=1 // pred_region
      _
    $region25: #{tpu_custom_call.1} parent=1 // pred_fallthru
      _
    // Predicated region
    $region26: #{tpu_custom_call.1} parent=1 // pred_check
      _
    $region27: #{tpu_custom_call.1} parent=1 // pred_check_branch
      %60 = sbr.rel (0) target = $region29
    $region28: #{tpu_custom_call.1} parent=1 // pred_region
      _
    $region29: #{tpu_custom_call.1} parent=1 // pred_fallthru
      _
    // Predicated region
    $region30: #{tpu_custom_call.1} parent=1 // pred_check
      _
    $region31: #{tpu_custom_call.1} parent=1 // pred_check_branch
      %62 = sbr.rel (0) target = $region33
    $region32: #{tpu_custom_call.1} parent=1 // pred_region
      %63 = dma.done [#allocation4], 256
    $region33: #{tpu_custom_call.1} parent=1 // pred_fallthru
      _
    // Predicated region
    $region34: #{tpu_custom_call.1} parent=1 // pred_check
      _
    $region35: #{tpu_custom_call.1} parent=1 // pred_check_branch
      %65 = sbr.rel (0) target = $region37
    $region36: #{tpu_custom_call.1} parent=1 // pred_region
      %66 = dma.done [#allocation7], 512
    $region37: #{tpu_custom_call.1} parent=1 // pred_fallthru
      _
    // Predicated region
    $region38: #{tpu_custom_call.1} parent=1 // pred_check
      _
    $region39: #{tpu_custom_call.1} parent=1 // pred_check_branch
      %68 = sbr.rel (0) target = $region41
    $region40: #{tpu_custom_call.1} parent=1 // pred_region
      %69 = dma.done [#allocation7], 512
    $region41: #{tpu_custom_call.1} parent=1 // pred_fallthru
      _
    %v70 = vld [vmem:[#allocation3] sm:$0xff]
    %v71 = vld [vmem:[#allocation3 + $0x8] sm:$0xff]
    %v72 = vld [vmem:[#allocation6] sm:$0xff]
    %v73 = vld [vmem:[#allocation6 + $0x8] sm:$0xff]
    %v74 = vld [vmem:[#allocation6 + $0x10] sm:$0xff]
    %v75 = vld [vmem:[#allocation6 + $0x18] sm:$0xff]
    %v76 = vld [vmem:[%s2] sm:$0x1]
    %v78 = vlaneseq
    %v79 = vshrl.u32 %v78, 7
    %v80 = vsub.s32 0, %v79
    %v81 = vrot.slane %v76, %v80
    %vm83 = vcmask 261120
    %v85 = vsel %vm83, %v70, 0
    %v88 = vsel %vm83, %v71, 0
    %90 = vmatprep.subr.mxu0 0.0
    %91 = vmatpush1.msra.mxu0 %v72
    %92 = vmatprep.subr.mxu0 0.0
    %93 = vmatpush1.msra.mxu0 %v73
    %94 = vmatprep.subr.mxu0 0.0
    %95 = vmatpush1.msra.mxu0 %v74
    %96 = vmatprep.subr.mxu0 0.0
    %97 = vmatpush1.msra.mxu0 %v75
    %98 = vmatprep.subr.mxu0 0.0
    %99 = vmatpush1.msra.mxu0 0.0
    %100 = vmatprep.subr.mxu0 0.0
    %101 = vmatpush1.msra.mxu0 0.0
    %102 = vmatprep.subr.mxu0 0.0
    %103 = vmatpush1.msra.mxu0 0.0
    %104 = vmatprep.subr.mxu0 0.0
    %105 = vmatpush1.msra.mxu0 0.0
    %106 = vmatprep.subr.mxu0 0.0
    %107 = vmatpush1.msra.mxu0 0.0
    %108 = vmatprep.subr.mxu0 0.0
    %109 = vmatpush1.msra.mxu0 0.0
    %110 = vmatprep.subr.mxu0 0.0
    %111 = vmatpush1.msra.mxu0 0.0
    %112 = vmatprep.subr.mxu0 0.0
    %113 = vmatpush1.msra.mxu0 0.0
    %114 = vmatprep.subr.mxu0 0.0
    %115 = vmatpush1.msra.mxu0 0.0
    %116 = vmatprep.subr.mxu0 0.0
    %117 = vmatpush1.msra.mxu0 0.0
    %118 = vmatprep.subr.mxu0 0.0
    %119 = vmatpush1.msra.mxu0 0.0
    %120 = vmatprep.subr.mxu0 0.0
    %121 = vmatpush1.msra.mxu0 0.0
    %122 = vmatprep.subr.mxu0 0.0
    %123 = vmatpush1.msra.mxu0 0.0
    %124 = vmatprep.subr.mxu0 0.0
    %125 = vmatpush1.msra.mxu0 0.0
    %126 = vmatprep.subr.mxu0 0.0
    %127 = vmatpush1.msra.mxu0 0.0
    %128 = vmatprep.subr.mxu0 0.0
    %129 = vmatpush1.msra.mxu0 0.0
    %130 = vmatprep.subr.mxu0 0.0
    %131 = vmatpush1.msra.mxu0 0.0
    %132 = vmatprep.subr.mxu0 0.0
    %133 = vmatpush1.msra.mxu0 0.0
    %134 = vmatprep.subr.mxu0 0.0
    %135 = vmatpush1.msra.mxu0 0.0
    %136 = vmatprep.subr.mxu0 0.0
    %137 = vmatpush1.msra.mxu0 0.0
    %138 = vmatprep.subr.mxu0 0.0
    %139 = vmatpush1.msra.mxu0 0.0
    %140 = vmatprep.subr.mxu0 0.0
    %141 = vmatpush1.msra.mxu0 0.0
    %142 = vmatprep.subr.mxu0 0.0
    %143 = vmatpush1.msra.mxu0 0.0
    %144 = vmatprep.subr.mxu0 0.0
    %145 = vmatpush1.msra.mxu0 0.0
    %146 = vmatprep.subr.mxu0 0.0
    %147 = vmatpush1.msra.mxu0 0.0
    %148 = vmatprep.subr.mxu0 0.0
    %149 = vmatpush1.msra.mxu0 0.0
    %150 = vmatprep.subr.mxu0 0.0
    %151 = vmatpush1.msra.mxu0 0.0
    %152 = vmatprep.subr.mxu0 0.0
    %153 = vmatpush1.msra.mxu0 0.0
    %154 = vmatprep.mubr.f32.mxu0 0.0
    %155 = vmatmul.mubr.f32.gmra.mrb[0].mxu0 %v85
    %v156 = vpop.f32.mrb[0].mxu0
    %v157 = vadd.f32 %v81, %v156
    %v158 = vpop.f32.mrb[0].mxu0
    %159 = vmatprep.mubr.f32.mxu0 0.0
    %160 = vmatmul.mubr.f32.gmra.mrb[0].mxu0 %v88
    %v161 = vpop.f32.mrb[0].mxu0
    %v162 = vadd.f32 %v81, %v161
    %v163 = vpop.f32.mrb[0].mxu0
    %164 = vdwg.mxu0
    %v165 = vmax.f32 %v157, 0.0
    %v166 = vmax.f32 %v162, 0.0
    %v167 = vld [vmem:[#allocation8] sm:$0xff]
    %v168 = vld [vmem:[#allocation8 + $0x8] sm:$0xff]
    %v169 = vld [vmem:[#allocation8 + $0x10] sm:$0xff]
    %v170 = vld [vmem:[#allocation8 + $0x18] sm:$0xff]
    %v171 = vld [vmem:[%s4] sm:$0x1]
    %v173 = vlaneseq
    %v174 = vshrl.u32 %v173, 7
    %v175 = vsub.s32 0, %v174
    %v176 = vrot.slane %v171, %v175
    %v179 = vsel %vm83, %v165, 0
    %v182 = vsel %vm83, %v166, 0
    %184 = vmatprep.subr.mxu0 0.0
    %185 = vmatpush1.msra.mxu0 %v167
    %186 = vmatprep.subr.mxu0 0.0
    %187 = vmatpush1.msra.mxu0 %v168
    %188 = vmatprep.subr.mxu0 0.0
    %189 = vmatpush1.msra.mxu0 %v169
    %190 = vmatprep.subr.mxu0 0.0
    %191 = vmatpush1.msra.mxu0 %v170
    %192 = vmatprep.subr.mxu0 0.0
    %193 = vmatpush1.msra.mxu0 0.0
    %194 = vmatprep.subr.mxu0 0.0
    %195 = vmatpush1.msra.mxu0 0.0
    %196 = vmatprep.subr.mxu0 0.0
    %197 = vmatpush1.msra.mxu0 0.0
    %198 = vmatprep.subr.mxu0 0.0
    %199 = vmatpush1.msra.mxu0 0.0
    %200 = vmatprep.subr.mxu0 0.0
    %201 = vmatpush1.msra.mxu0 0.0
    %202 = vmatprep.subr.mxu0 0.0
    %203 = vmatpush1.msra.mxu0 0.0
    %204 = vmatprep.subr.mxu0 0.0
    %205 = vmatpush1.msra.mxu0 0.0
    %206 = vmatprep.subr.mxu0 0.0
    %207 = vmatpush1.msra.mxu0 0.0
    %208 = vmatprep.subr.mxu0 0.0
    %209 = vmatpush1.msra.mxu0 0.0
    %210 = vmatprep.subr.mxu0 0.0
    %211 = vmatpush1.msra.mxu0 0.0
    %212 = vmatprep.subr.mxu0 0.0
    %213 = vmatpush1.msra.mxu0 0.0
    %214 = vmatprep.subr.mxu0 0.0
    %215 = vmatpush1.msra.mxu0 0.0
    %216 = vmatprep.subr.mxu0 0.0
    %217 = vmatpush1.msra.mxu0 0.0
    %218 = vmatprep.subr.mxu0 0.0
    %219 = vmatpush1.msra.mxu0 0.0
    %220 = vmatprep.subr.mxu0 0.0
    %221 = vmatpush1.msra.mxu0 0.0
    %222 = vmatprep.subr.mxu0 0.0
    %223 = vmatpush1.msra.mxu0 0.0
    %224 = vmatprep.subr.mxu0 0.0
    %225 = vmatpush1.msra.mxu0 0.0
    %226 = vmatprep.subr.mxu0 0.0
    %227 = vmatpush1.msra.mxu0 0.0
    %228 = vmatprep.subr.mxu0 0.0
    %229 = vmatpush1.msra.mxu0 0.0
    %230 = vmatprep.subr.mxu0 0.0
    %231 = vmatpush1.msra.mxu0 0.0
    %232 = vmatprep.subr.mxu0 0.0
    %233 = vmatpush1.msra.mxu0 0.0
    %234 = vmatprep.subr.mxu0 0.0
    %235 = vmatpush1.msra.mxu0 0.0
    %236 = vmatprep.subr.mxu0 0.0
    %237 = vmatpush1.msra.mxu0 0.0
    %238 = vmatprep.subr.mxu0 0.0
    %239 = vmatpush1.msra.mxu0 0.0
    %240 = vmatprep.subr.mxu0 0.0
    %241 = vmatpush1.msra.mxu0 0.0
    %242 = vmatprep.subr.mxu0 0.0
    %243 = vmatpush1.msra.mxu0 0.0
    %244 = vmatprep.subr.mxu0 0.0
    %245 = vmatpush1.msra.mxu0 0.0
    %246 = vmatprep.subr.mxu0 0.0
    %247 = vmatpush1.msra.mxu0 0.0
    %248 = vmatprep.mubr.f32.mxu0 0.0
    %249 = vmatmul.mubr.f32.gmra.mrb[0].mxu0 %v179
    %v250 = vpop.f32.mrb[0].mxu0
    %v251 = vadd.f32 %v176, %v250
    %v252 = vpop.f32.mrb[0].mxu0
    %253 = vmatprep.mubr.f32.mxu0 0.0
    %254 = vmatmul.mubr.f32.gmra.mrb[0].mxu0 %v182
    %v255 = vpop.f32.mrb[0].mxu0
    %v256 = vadd.f32 %v176, %v255
    %v257 = vpop.f32.mrb[0].mxu0
    %258 = vdwg.mxu0
    %v259 = vmax.f32 %v251, 0.0
    %v260 = vmax.f32 %v256, 0.0
    %v261 = vld [vmem:[%s5] sm:$0x1]
    %v262 = vld [vmem:[#allocation2] sm:$0x1]
    %264 = vset.pattern.permute.xlu0 0
    %265 = vperm.xlu0 %264, %v262
    %v266 = vpop.permute.xlu0 %265
    %v268 = vlaneseq
    %v269 = vshrl.u32 %v268, 7
    %v270 = vsub.s32 0, %v269
    %v271 = vrot.slane %v266, %v270
    %v273 = vsel %vm83, %v261, 0
    %v276 = vsel %vm83, %v259, 0
    %v279 = vsel %vm83, %v260, 0
    %281 = vmatprep.subr.mxu0 0.0
    %282 = vmatpush1.xpose.msra.mxu0 %v276
    %283 = vmatprep.subr.mxu0 0.0
    %284 = vmatpush1.xpose.msra.mxu0 %v279
    %285 = vmatprep.subr.mxu0 0.0
    %286 = vmatpush1.xpose.msra.mxu0 0.0
    %287 = vmatprep.subr.mxu0 0.0
    %288 = vmatpush1.xpose.msra.mxu0 0.0
    %289 = vmatprep.subr.mxu0 0.0
    %290 = vmatpush1.xpose.msra.mxu0 0.0
    %291 = vmatprep.subr.mxu0 0.0
    %292 = vmatpush1.xpose.msra.mxu0 0.0
    %293 = vmatprep.subr.mxu0 0.0
    %294 = vmatpush1.xpose.msra.mxu0 0.0
    %295 = vmatprep.subr.mxu0 0.0
    %296 = vmatpush1.xpose.msra.mxu0 0.0
    %297 = vmatprep.subr.mxu0 0.0
    %298 = vmatpush1.xpose.msra.mxu0 0.0
    %299 = vmatprep.subr.mxu0 0.0
    %300 = vmatpush1.xpose.msra.mxu0 0.0
    %301 = vmatprep.subr.mxu0 0.0
    %302 = vmatpush1.xpose.msra.mxu0 0.0
    %303 = vmatprep.subr.mxu0 0.0
    %304 = vmatpush1.xpose.msra.mxu0 0.0
    %305 = vmatprep.subr.mxu0 0.0
    %306 = vmatpush1.xpose.msra.mxu0 0.0
    %307 = vmatprep.subr.mxu0 0.0
    %308 = vmatpush1.xpose.msra.mxu0 0.0
    %309 = vmatprep.subr.mxu0 0.0
    %310 = vmatpush1.xpose.msra.mxu0 0.0
    %311 = vmatprep.subr.mxu0 0.0
    %312 = vmatpush1.xpose.msra.mxu0 0.0
    %313 = vmatprep.subr.mxu0 0.0
    %314 = vmatpush1.xpose.msra.mxu0 0.0
    %315 = vmatprep.subr.mxu0 0.0
    %316 = vmatpush1.xpose.msra.mxu0 0.0
    %317 = vmatprep.subr.mxu0 0.0
    %318 = vmatpush1.xpose.msra.mxu0 0.0
    %319 = vmatprep.subr.mxu0 0.0
    %320 = vmatpush1.xpose.msra.mxu0 0.0
    %321 = vmatprep.subr.mxu0 0.0
    %322 = vmatpush1.xpose.msra.mxu0 0.0
    %323 = vmatprep.subr.mxu0 0.0
    %324 = vmatpush1.xpose.msra.mxu0 0.0
    %325 = vmatprep.subr.mxu0 0.0
    %326 = vmatpush1.xpose.msra.mxu0 0.0
    %327 = vmatprep.subr.mxu0 0.0
    %328 = vmatpush1.xpose.msra.mxu0 0.0
    %329 = vmatprep.subr.mxu0 0.0
    %330 = vmatpush1.xpose.msra.mxu0 0.0
    %331 = vmatprep.subr.mxu0 0.0
    %332 = vmatpush1.xpose.msra.mxu0 0.0
    %333 = vmatprep.subr.mxu0 0.0
    %334 = vmatpush1.xpose.msra.mxu0 0.0
    %335 = vmatprep.subr.mxu0 0.0
    %336 = vmatpush1.xpose.msra.mxu0 0.0
    %337 = vmatprep.subr.mxu0 0.0
    %338 = vmatpush1.xpose.msra.mxu0 0.0
    %339 = vmatprep.subr.mxu0 0.0
    %340 = vmatpush1.xpose.msra.mxu0 0.0
    %341 = vmatprep.subr.mxu0 0.0
    %342 = vmatpush1.xpose.msra.mxu0 0.0
    %343 = vmatprep.subr.mxu0 0.0
    %344 = vmatpush1.xpose.msra.mxu0 0.0
    %345 = vmatprep.mubr.f32.mxu0 0.0
    %346 = vmatmul.mubr.f32.gmra.mrb[0].mxu0 %v273
    %v347 = vpop.f32.mrb[0].mxu0
    %v348 = vadd.f32 %v271, %v347
    %v349 = vpop.f32.mrb[0].mxu0
    %350 = vdwg.mxu0
    %vm351 = vcmask 122880
    %352 = vst.msk [vmem:[#allocation9] sm:$0x1] %vm351, %v348
    // Predicated region
    $region42: #{tpu_custom_call.1} parent=1 // pred_check
      _
    $region43: #{tpu_custom_call.1} parent=1 // pred_check_branch
      %354 = sbr.rel (0) target = $region45
    $region44: #{tpu_custom_call.1} parent=1 // pred_region
      %s356 = ssub.s32 16, 16
      %357 = vsyncadd [#allocation5], %s356
      %s359 = sshll.u32 [#allocation9], 4
      %s360 = int_to_ptr.vmem [resolvable:$true] %s359
      %362 = dma.vmem_to_hbm [thread:$0]  %s360, 16, %s7, [#allocation5]
    $region45: #{tpu_custom_call.1} parent=1 // pred_fallthru
      _
    // Predicated region
    $region46: #{tpu_custom_call.1} parent=1 // pred_check
      _
    $region47: #{tpu_custom_call.1} parent=1 // pred_check_branch
      %364 = sbr.rel (0) target = $region49
    $region48: #{tpu_custom_call.1} parent=1 // pred_region
      %365 = dma.done [#allocation5], 16
    $region49: #{tpu_custom_call.1} parent=1 // pred_fallthru
      _
    %366 = vsyncpa [#allocation4], 1
    %367 = vsyncpa [#allocation7], 1
    %368 = vsyncpa [#allocation5], 1

</llo_original>
